<compile_context>
chip_gen: v5e
topology: v5e:2x2
jax: 0.10.0
libtpu: 0.0.40
codegen_flags: <defaults>
</compile_context>

<pallas_src>
import jax
import jax.numpy as jnp
from jax.experimental import pallas as pl
from jax.experimental.pallas import tpu as pltpu


_OUT_H = 23        # true output spatial size
_PAD_H = 24        # sublane-aligned kernel output rows (multiple of 8)
_PAD_W = 128       # lane-aligned kernel output cols


def _folded_kernel(s_ref, x_ref, o_ref):
    # s_ref (SMEM, f32[3]) holds [W, B, b2].
    w_s = s_ref[0]
    b_s = s_ref[1]
    b2_s = s_ref[2]

    # Bias mask odd(p)*odd(q) over the padded (24,128) block, built in-register.
    # Values in the padded region (p>=23 or q>=23) are sliced off by the wrapper.
    p_idx = jax.lax.broadcasted_iota(jnp.int32, (_PAD_H, _PAD_W), 0)
    q_idx = jax.lax.broadcasted_iota(jnp.int32, (_PAD_H, _PAD_W), 1)
    mask = jnp.where((p_idx % 2 == 1) & (q_idx % 2 == 1), 1.0, 0.0)

    # Base: out = b2 + B * mask  -- single unmasked lane-dense (24,128) store.
    o_ref[...] = b2_s + b_s * mask

    # C^T (8,128) generated in-register: CT[j,q] = 1 iff q % 4 == 1 and 4*j == q+3.
    j_idx = jax.lax.broadcasted_iota(jnp.int32, (8, _PAD_W), 0)
    qj_idx = jax.lax.broadcasted_iota(jnp.int32, (8, _PAD_W), 1)
    ct = jnp.where((qj_idx % 4 == 1) & (4 * j_idx == qj_idx + 3), 1.0, 0.0)

    # Single lane-dense MXU pass: t = x @ C^T  ->  (8,128),
    # t[i, q] = x[i, (q+3)//4] for q % 4 == 1, else 0.
    t = jnp.dot(x_ref[...], ct, preferred_element_type=jnp.float32)

    # Odd-lane mask for the contributing rows (all of them have odd p).
    q_row = jax.lax.broadcasted_iota(jnp.int32, (1, _PAD_W), 1)
    odd_q = jnp.where(q_row % 2 == 1, 1.0, 0.0)                       # (1,128)

    # Scatter the 6 contributing rows p = 4j-3 with static (1,128) row stores,
    # replacing the second (sublane-scatter) matmul on the critical path.
    for j in range(1, 7):
        p = 4 * j - 3
        o_ref[pl.ds(p, 1), :] = b2_s + b_s * odd_q + w_s * t[j:j + 1, :]


@jax.jit
def model_forward(x_nchw, w1, b1, w2, b2):
    """Forward pass of the PyTorch Model.

    x_nchw: (1,1,8,8); w1: (1,16,1,1); b1: (16,); w2: (16,1,1,1); b2: (1,).
    Returns v2 of shape (1,1,23,23).
    """
    x2d = x_nchw[0, 0].astype(jnp.float32)                   # (8, 8)
    w1c = w1[0, :, 0, 0]                                     # (16,) out-ch scalars
    w2c = w2[:, 0, 0, 0]                                     # (16,) in-ch scalars

    # Fold the channel axis in the wrapper (tiny dots, fused into the XLA graph).
    W = jnp.sum(w1c * w2c)
    B = jnp.sum(b1 * w2c)
    scalars = jnp.stack([W, B, b2[0]]).astype(jnp.float32)   # (3,) -> SMEM

    out_pad = pl.pallas_call(
        _folded_kernel,
        out_shape=jax.ShapeDtypeStruct((_PAD_H, _PAD_W), jnp.float32),
        in_specs=[
            pl.BlockSpec(memory_space=pltpu.MemorySpace.SMEM),   # [W, B, b2]
            pl.BlockSpec(memory_space=pltpu.MemorySpace.VMEM),   # x (8, 8)
        ],
        out_specs=pl.BlockSpec(memory_space=pltpu.MemorySpace.VMEM),
        cost_estimate=pl.CostEstimate(
            flops=26_000, transcendentals=0, bytes_accessed=13_000),
    )(scalars, x2d)

    v2 = out_pad[:_OUT_H, :_OUT_H].reshape(1, 1, _OUT_H, _OUT_H)
    # TODO(synk): torch.reshape(v2, (1, 16, 8, 8)) in the original module is
    # invalid (529 != 1024 elements) and raises in PyTorch too; return v2.
    return v2


def _ref_forward(x, w1, b1, w2, b2):
    """Pure-JAX reference of the two ConvTranspose2d layers (correctness check)."""
    def convt(xin, w, b, stride=2, padding=1):
        n, c, h, wd = xin.shape
        full = (h - 1) * stride + 1
        contrib = jnp.einsum('nchw,co->nohw', xin, w[:, :, 0, 0])
        y = jnp.zeros((n, w.shape[1], full, full), xin.dtype)
        y = y.at[:, :, ::stride, ::stride].set(contrib)
        y = y[:, :, padding:full - padding, padding:full - padding]
        return y + b[None, :, None, None]
    return convt(convt(x, w1, b1), w2, b2)


if __name__ == "__main__":
    key = jax.random.PRNGKey(0)
    kx, k1, k2, k3, k4 = jax.random.split(key, 5)

    # Input matches the PyTorch x1 shape.
    x = jax.random.normal(kx, (1, 1, 8, 8), dtype=jnp.float32)

    # Deterministic params (ConvTranspose2d weight layout: (in, out, kH, kW)).
    w1 = jax.random.uniform(k1, (1, 16, 1, 1), jnp.float32, -1.0, 1.0)
    b1 = jax.random.uniform(k2, (16,), jnp.float32, -1.0, 1.0)
    w2 = jax.random.uniform(k3, (16, 1, 1, 1), jnp.float32, -0.25, 0.25)
    b2 = jax.random.uniform(k4, (1,), jnp.float32, -0.25, 0.25)

    out = model_forward(x, w1, b1, w2, b2)
    out = jax.block_until_ready(out)

    ref = _ref_forward(x, w1, b1, w2, b2)
    assert out.shape == (1, 1, 23, 23)
    assert jnp.allclose(out, ref, atol=1e-5, rtol=1e-5), "mismatch vs reference"

    print("KERNEL_OK")
</pallas_src>

<mosaic_0001>
module attributes {stable_mosaic.version = 11 : i64} {
  func.func @_folded_kernel(%arg0: memref<3xf32, #tpu.memory_space<smem>>, %arg1: memref<8x8xf32, #tpu.memory_space<vmem>>, %arg2: memref<24x128xf32, #tpu.memory_space<vmem>>) attributes {dimension_semantics = [], scalar_prefetch = 0 : i64, scratch_operands = 0 : i64, tpu.core_type = #tpu.core_type<tc>} {
    %c0 = arith.constant 0 : index
    %0 = memref.load %arg0[%c0] : memref<3xf32, #tpu.memory_space<smem>>
    %c1 = arith.constant 1 : index
    %1 = memref.load %arg0[%c1] : memref<3xf32, #tpu.memory_space<smem>>
    %c2 = arith.constant 2 : index
    %2 = memref.load %arg0[%c2] : memref<3xf32, #tpu.memory_space<smem>>
    %3 = tpu.iota {dimensions = array<i32: 0>} : vector<24x128xi32>
    %4 = tpu.iota {dimensions = array<i32: 1>} : vector<24x128xi32>
    %c2_i32 = arith.constant 2 : i32
    %c0_i32 = arith.constant 0 : i32
    %5 = arith.cmpi eq, %c2_i32, %c0_i32 : i32
    %c1_i32 = arith.constant 1 : i32
    %6 = arith.select %5, %c1_i32, %c2_i32 : i32
    %7 = vector.broadcast %6 : i32 to vector<24x128xi32>
    %8 = arith.remsi %3, %7 : vector<24x128xi32>
    %c0_i32_0 = arith.constant 0 : i32
    %9 = vector.broadcast %c0_i32_0 : i32 to vector<24x128xi32>
    %10 = arith.cmpi ne, %8, %9 : vector<24x128xi32>
    %c0_i32_1 = arith.constant 0 : i32
    %11 = vector.broadcast %c0_i32_1 : i32 to vector<24x128xi32>
    %12 = arith.cmpi slt, %8, %11 : vector<24x128xi32>
    %c0_i32_2 = arith.constant 0 : i32
    %13 = arith.cmpi slt, %6, %c0_i32_2 : i32
    %14 = vector.broadcast %13 : i1 to vector<24x128xi1>
    %15 = vector.broadcast %14 : vector<24x128xi1> to vector<24x128xi1>
    %16 = arith.xori %12, %15 : vector<24x128xi1>
    %17 = arith.andi %16, %10 : vector<24x128xi1>
    %18 = vector.broadcast %6 : i32 to vector<24x128xi32>
    %19 = arith.addi %8, %18 : vector<24x128xi32>
    %20 = arith.select %17, %19, %8 : vector<24x128xi1>, vector<24x128xi32>
    %c1_i32_3 = arith.constant 1 : i32
    %21 = vector.broadcast %c1_i32_3 : i32 to vector<24x128xi32>
    %22 = arith.cmpi eq, %20, %21 : vector<24x128xi32>
    %c2_i32_4 = arith.constant 2 : i32
    %c0_i32_5 = arith.constant 0 : i32
    %23 = arith.cmpi eq, %c2_i32_4, %c0_i32_5 : i32
    %c1_i32_6 = arith.constant 1 : i32
    %24 = arith.select %23, %c1_i32_6, %c2_i32_4 : i32
    %25 = vector.broadcast %24 : i32 to vector<24x128xi32>
    %26 = arith.remsi %4, %25 : vector<24x128xi32>
    %c0_i32_7 = arith.constant 0 : i32
    %27 = vector.broadcast %c0_i32_7 : i32 to vector<24x128xi32>
    %28 = arith.cmpi ne, %26, %27 : vector<24x128xi32>
    %c0_i32_8 = arith.constant 0 : i32
    %29 = vector.broadcast %c0_i32_8 : i32 to vector<24x128xi32>
    %30 = arith.cmpi slt, %26, %29 : vector<24x128xi32>
    %c0_i32_9 = arith.constant 0 : i32
    %31 = arith.cmpi slt, %24, %c0_i32_9 : i32
    %32 = vector.broadcast %31 : i1 to vector<24x128xi1>
    %33 = vector.broadcast %32 : vector<24x128xi1> to vector<24x128xi1>
    %34 = arith.xori %30, %33 : vector<24x128xi1>
    %35 = arith.andi %34, %28 : vector<24x128xi1>
    %36 = vector.broadcast %24 : i32 to vector<24x128xi32>
    %37 = arith.addi %26, %36 : vector<24x128xi32>
    %38 = arith.select %35, %37, %26 : vector<24x128xi1>, vector<24x128xi32>
    %c1_i32_10 = arith.constant 1 : i32
    %39 = vector.broadcast %c1_i32_10 : i32 to vector<24x128xi32>
    %40 = arith.cmpi eq, %38, %39 : vector<24x128xi32>
    %41 = arith.andi %22, %40 : vector<24x128xi1>
    %cst = arith.constant 1.000000e+00 : f32
    %cst_11 = arith.constant 0.000000e+00 : f32
    %42 = vector.broadcast %cst : f32 to vector<24x128xf32>
    %43 = vector.broadcast %cst_11 : f32 to vector<24x128xf32>
    %44 = arith.select %41, %42, %43 : vector<24x128xi1>, vector<24x128xf32>
    %45 = vector.broadcast %1 : f32 to vector<24x128xf32>
    %46 = arith.mulf %45, %44 : vector<24x128xf32>
    %47 = vector.broadcast %2 : f32 to vector<24x128xf32>
    %48 = arith.addf %47, %46 : vector<24x128xf32>
    %c0_12 = arith.constant 0 : index
    %c0_13 = arith.constant 0 : index
    %49 = vector.load %arg2[%c0_12, %c0_13] : memref<24x128xf32, #tpu.memory_space<vmem>>, vector<24x128xf32>
    tpu.vector_store %arg2[%c0_12, %c0_13], %48 {strides = array<i32>} : memref<24x128xf32, #tpu.memory_space<vmem>>, vector<24x128xf32>,
    %50 = tpu.iota {dimensions = array<i32: 0>} : vector<8x128xi32>
    %51 = tpu.iota {dimensions = array<i32: 1>} : vector<8x128xi32>
    %c4_i32 = arith.constant 4 : i32
    %c0_i32_14 = arith.constant 0 : i32
    %52 = arith.cmpi eq, %c4_i32, %c0_i32_14 : i32
    %c1_i32_15 = arith.constant 1 : i32
    %53 = arith.select %52, %c1_i32_15, %c4_i32 : i32
    %54 = vector.broadcast %53 : i32 to vector<8x128xi32>
    %55 = arith.remsi %51, %54 : vector<8x128xi32>
    %c0_i32_16 = arith.constant 0 : i32
    %56 = vector.broadcast %c0_i32_16 : i32 to vector<8x128xi32>
    %57 = arith.cmpi ne, %55, %56 : vector<8x128xi32>
    %c0_i32_17 = arith.constant 0 : i32
    %58 = vector.broadcast %c0_i32_17 : i32 to vector<8x128xi32>
    %59 = arith.cmpi slt, %55, %58 : vector<8x128xi32>
    %c0_i32_18 = arith.constant 0 : i32
    %60 = arith.cmpi slt, %53, %c0_i32_18 : i32
    %61 = vector.broadcast %60 : i1 to vector<8x128xi1>
    %62 = vector.broadcast %61 : vector<8x128xi1> to vector<8x128xi1>
    %63 = arith.xori %59, %62 : vector<8x128xi1>
    %64 = arith.andi %63, %57 : vector<8x128xi1>
    %65 = vector.broadcast %53 : i32 to vector<8x128xi32>
    %66 = arith.addi %55, %65 : vector<8x128xi32>
    %67 = arith.select %64, %66, %55 : vector<8x128xi1>, vector<8x128xi32>
    %c1_i32_19 = arith.constant 1 : i32
    %68 = vector.broadcast %c1_i32_19 : i32 to vector<8x128xi32>
    %69 = arith.cmpi eq, %67, %68 : vector<8x128xi32>
    %c4_i32_20 = arith.constant 4 : i32
    %70 = vector.broadcast %c4_i32_20 : i32 to vector<8x128xi32>
    %71 = arith.muli %70, %50 : vector<8x128xi32>
    %c3_i32 = arith.constant 3 : i32
    %72 = vector.broadcast %c3_i32 : i32 to vector<8x128xi32>
    %73 = arith.addi %51, %72 : vector<8x128xi32>
    %74 = arith.cmpi eq, %71, %73 : vector<8x128xi32>
    %75 = arith.andi %69, %74 : vector<8x128xi1>
    %cst_21 = arith.constant 1.000000e+00 : f32
    %cst_22 = arith.constant 0.000000e+00 : f32
    %76 = vector.broadcast %cst_21 : f32 to vector<8x128xf32>
    %77 = vector.broadcast %cst_22 : f32 to vector<8x128xf32>
    %78 = arith.select %75, %76, %77 : vector<8x128xi1>, vector<8x128xf32>
    %c0_23 = arith.constant 0 : index
    %c0_24 = arith.constant 0 : index
    %79 = vector.load %arg1[%c0_23, %c0_24] : memref<8x8xf32, #tpu.memory_space<vmem>>, vector<8x8xf32>
    %cst_25 = arith.constant dense<0.000000e+00> : vector<8x128xf32>
    %80 = tpu.matmul %79, %78, %cst_25 {dimension_numbers = #tpu.dot_dimension_numbers<[1], [0], [0], [1], [0, 0, 1, 1], [], []>} : vector<8x8xf32>, vector<8x128xf32>, vector<8x128xf32> -> vector<8x128xf32>
    %81 = tpu.iota {dimensions = array<i32: 1>} : vector<1x128xi32>
    %c2_i32_26 = arith.constant 2 : i32
    %c0_i32_27 = arith.constant 0 : i32
    %82 = arith.cmpi eq, %c2_i32_26, %c0_i32_27 : i32
    %c1_i32_28 = arith.constant 1 : i32
    %83 = arith.select %82, %c1_i32_28, %c2_i32_26 : i32
    %84 = vector.broadcast %83 : i32 to vector<1x128xi32>
    %85 = arith.remsi %81, %84 : vector<1x128xi32>
    %c0_i32_29 = arith.constant 0 : i32
    %86 = vector.broadcast %c0_i32_29 : i32 to vector<1x128xi32>
    %87 = arith.cmpi ne, %85, %86 : vector<1x128xi32>
    %c0_i32_30 = arith.constant 0 : i32
    %88 = vector.broadcast %c0_i32_30 : i32 to vector<1x128xi32>
    %89 = arith.cmpi slt, %85, %88 : vector<1x128xi32>
    %c0_i32_31 = arith.constant 0 : i32
    %90 = arith.cmpi slt, %83, %c0_i32_31 : i32
    %91 = vector.broadcast %90 : i1 to vector<1x128xi1>
    %92 = vector.broadcast %91 : vector<1x128xi1> to vector<1x128xi1>
    %93 = arith.xori %89, %92 : vector<1x128xi1>
    %94 = arith.andi %93, %87 : vector<1x128xi1>
    %95 = vector.broadcast %83 : i32 to vector<1x128xi32>
    %96 = arith.addi %85, %95 : vector<1x128xi32>
    %97 = arith.select %94, %96, %85 : vector<1x128xi1>, vector<1x128xi32>
    %c1_i32_32 = arith.constant 1 : i32
    %98 = vector.broadcast %c1_i32_32 : i32 to vector<1x128xi32>
    %99 = arith.cmpi eq, %97, %98 : vector<1x128xi32>
    %cst_33 = arith.constant 1.000000e+00 : f32
    %cst_34 = arith.constant 0.000000e+00 : f32
    %100 = vector.broadcast %cst_33 : f32 to vector<1x128xf32>
    %101 = vector.broadcast %cst_34 : f32 to vector<1x128xf32>
    %102 = arith.select %99, %100, %101 : vector<1x128xi1>, vector<1x128xf32>
    %103 = vector.broadcast %1 : f32 to vector<1x128xf32>
    %104 = arith.mulf %103, %102 : vector<1x128xf32>
    %105 = vector.broadcast %2 : f32 to vector<1x128xf32>
    %106 = arith.addf %105, %104 : vector<1x128xf32>
    %107 = vector.extract_strided_slice %80 {offsets = [1, 0], sizes = [1, 128], strides = [1, 1]} : vector<8x128xf32> to vector<1x128xf32>
    %108 = vector.broadcast %0 : f32 to vector<1x128xf32>
    %109 = arith.mulf %108, %107 : vector<1x128xf32>
    %110 = arith.addf %106, %109 : vector<1x128xf32>
    %c1_35 = arith.constant 1 : index
    %c0_36 = arith.constant 0 : index
    %111 = vector.load %arg2[%c1_35, %c0_36] : memref<24x128xf32, #tpu.memory_space<vmem>>, vector<1x128xf32>
    tpu.vector_store %arg2[%c1_35, %c0_36], %110 {strides = array<i32>} : memref<24x128xf32, #tpu.memory_space<vmem>>, vector<1x128xf32>,
    %112 = vector.broadcast %1 : f32 to vector<1x128xf32>
    %113 = arith.mulf %112, %102 : vector<1x128xf32>
    %114 = vector.broadcast %2 : f32 to vector<1x128xf32>
    %115 = arith.addf %114, %113 : vector<1x128xf32>
    %116 = vector.extract_strided_slice %80 {offsets = [2, 0], sizes = [1, 128], strides = [1, 1]} : vector<8x128xf32> to vector<1x128xf32>
    %117 = vector.broadcast %0 : f32 to vector<1x128xf32>
    %118 = arith.mulf %117, %116 : vector<1x128xf32>
    %119 = arith.addf %115, %118 : vector<1x128xf32>
    %c5 = arith.constant 5 : index
    %c0_37 = arith.constant 0 : index
    %120 = vector.load %arg2[%c5, %c0_37] : memref<24x128xf32, #tpu.memory_space<vmem>>, vector<1x128xf32>
    tpu.vector_store %arg2[%c5, %c0_37], %119 {strides = array<i32>} : memref<24x128xf32, #tpu.memory_space<vmem>>, vector<1x128xf32>,
    %121 = vector.broadcast %1 : f32 to vector<1x128xf32>
    %122 = arith.mulf %121, %102 : vector<1x128xf32>
    %123 = vector.broadcast %2 : f32 to vector<1x128xf32>
    %124 = arith.addf %123, %122 : vector<1x128xf32>
    %125 = vector.extract_strided_slice %80 {offsets = [3, 0], sizes = [1, 128], strides = [1, 1]} : vector<8x128xf32> to vector<1x128xf32>
    %126 = vector.broadcast %0 : f32 to vector<1x128xf32>
    %127 = arith.mulf %126, %125 : vector<1x128xf32>
    %128 = arith.addf %124, %127 : vector<1x128xf32>
    %c9 = arith.constant 9 : index
    %c0_38 = arith.constant 0 : index
    %129 = vector.load %arg2[%c9, %c0_38] : memref<24x128xf32, #tpu.memory_space<vmem>>, vector<1x128xf32>
    tpu.vector_store %arg2[%c9, %c0_38], %128 {strides = array<i32>} : memref<24x128xf32, #tpu.memory_space<vmem>>, vector<1x128xf32>,
    %130 = vector.broadcast %1 : f32 to vector<1x128xf32>
    %131 = arith.mulf %130, %102 : vector<1x128xf32>
    %132 = vector.broadcast %2 : f32 to vector<1x128xf32>
    %133 = arith.addf %132, %131 : vector<1x128xf32>
    %134 = vector.extract_strided_slice %80 {offsets = [4, 0], sizes = [1, 128], strides = [1, 1]} : vector<8x128xf32> to vector<1x128xf32>
    %135 = vector.broadcast %0 : f32 to vector<1x128xf32>
    %136 = arith.mulf %135, %134 : vector<1x128xf32>
    %137 = arith.addf %133, %136 : vector<1x128xf32>
    %c13 = arith.constant 13 : index
    %c0_39 = arith.constant 0 : index
    %138 = vector.load %arg2[%c13, %c0_39] : memref<24x128xf32, #tpu.memory_space<vmem>>, vector<1x128xf32>
    tpu.vector_store %arg2[%c13, %c0_39], %137 {strides = array<i32>} : memref<24x128xf32, #tpu.memory_space<vmem>>, vector<1x128xf32>,
    %139 = vector.broadcast %1 : f32 to vector<1x128xf32>
    %140 = arith.mulf %139, %102 : vector<1x128xf32>
    %141 = vector.broadcast %2 : f32 to vector<1x128xf32>
    %142 = arith.addf %141, %140 : vector<1x128xf32>
    %143 = vector.extract_strided_slice %80 {offsets = [5, 0], sizes = [1, 128], strides = [1, 1]} : vector<8x128xf32> to vector<1x128xf32>
    %144 = vector.broadcast %0 : f32 to vector<1x128xf32>
    %145 = arith.mulf %144, %143 : vector<1x128xf32>
    %146 = arith.addf %142, %145 : vector<1x128xf32>
    %c17 = arith.constant 17 : index
    %c0_40 = arith.constant 0 : index
    %147 = vector.load %arg2[%c17, %c0_40] : memref<24x128xf32, #tpu.memory_space<vmem>>, vector<1x128xf32>
    tpu.vector_store %arg2[%c17, %c0_40], %146 {strides = array<i32>} : memref<24x128xf32, #tpu.memory_space<vmem>>, vector<1x128xf32>,
    %148 = vector.broadcast %1 : f32 to vector<1x128xf32>
    %149 = arith.mulf %148, %102 : vector<1x128xf32>
    %150 = vector.broadcast %2 : f32 to vector<1x128xf32>
    %151 = arith.addf %150, %149 : vector<1x128xf32>
    %152 = vector.extract_strided_slice %80 {offsets = [6, 0], sizes = [1, 128], strides = [1, 1]} : vector<8x128xf32> to vector<1x128xf32>
    %153 = vector.broadcast %0 : f32 to vector<1x128xf32>
    %154 = arith.mulf %153, %152 : vector<1x128xf32>
    %155 = arith.addf %151, %154 : vector<1x128xf32>
    %c21 = arith.constant 21 : index
    %c0_41 = arith.constant 0 : index
    %156 = vector.load %arg2[%c21, %c0_41] : memref<24x128xf32, #tpu.memory_space<vmem>>, vector<1x128xf32>
    tpu.vector_store %arg2[%c21, %c0_41], %155 {strides = array<i32>} : memref<24x128xf32, #tpu.memory_space<vmem>>, vector<1x128xf32>,
    return
  }
}

</mosaic_0001>

<llo_original>
// kernel: model_forward.1
$region0: #{model_forward.1}
  #allocation0 [shape = 'u32[]', space=smem, size = 0x4, offset = 0x4, fixed_abs, tag = 'smem constant byte address 0x4 - core index']
  #allocation1 [shape = 'u32[72,128]{1,0:T(1,128)}', space=vmem, size = 0x9000, scoped, tag = 'internal scratch']
  %s0 = inlined_call_operand.vmem [shape: f32[3], index: 0, kind: input, shape index: {}]
  %s1 = inlined_call_operand.vmem [shape: f32[8,8], index: 1, kind: input, shape index: {}]
  %s2 = inlined_call_operand.vmem [shape: f32[24,128], index: 2, kind: output, shape index: {}]
  %s3 = sld [smem:[#allocation0]]
  $region22: #{model_forward.1} parent=0
    _
  %s5 = ssub.s32 1, %s3
  %s6 = scalar_select 0, %s5, %s3
  $region1: #{model_forward.1} parent=0
    #allocation2 [shape = 'u8[512]{0}', space=smem, size = 0x200, scoped, tag = 'input window, operand 0, single buffered']
    #allocation3 [shape = 's32[1]{0}', space=sflag, size = 0x4, scoped, tag = 'scoped memory for model_forward.1']
    %7 = vsyncpa [#allocation3], 0
    // Predicated region
    $region2: #{model_forward.1} parent=1 // pred_check
      _
    $region3: #{model_forward.1} parent=1 // pred_check_branch
      %9 = sbr.rel (0) target = $region5
    $region4: #{model_forward.1} parent=1 // pred_region
      %11 = vsyncadd [#allocation3], 0
      %s13 = sshll.u32 %s0, 4
      %s14 = int_to_ptr.vmem [resolvable:$true] %s13
      %16 = dma.vmem_to_smem %s14, 16, [#allocation2], [#allocation3]
    $region5: #{model_forward.1} parent=1 // pred_fallthru
      _
    // Predicated region
    $region6: #{model_forward.1} parent=1 // pred_check
      _
    $region7: #{model_forward.1} parent=1 // pred_check_branch
      %18 = sbr.rel (0) target = $region9
    $region8: #{model_forward.1} parent=1 // pred_region
      _
    $region9: #{model_forward.1} parent=1 // pred_fallthru
      _
    // Predicated region
    $region10: #{model_forward.1} parent=1 // pred_check
      _
    $region11: #{model_forward.1} parent=1 // pred_check_branch
      %20 = sbr.rel (0) target = $region13
    $region12: #{model_forward.1} parent=1 // pred_region
      %22 = dma.done [#allocation3], 16
    $region13: #{model_forward.1} parent=1 // pred_fallthru
      _
    %23 = sfence
    %s24 = sld [smem:[#allocation2]]
    %s25 = sld [smem:[#allocation2 + $0x1]]
    %s26 = sld [smem:[#allocation2 + $0x2]]
    %v27 = vlaneseq
    %v28 = vshrl.u32 %v27, 7
    %v29 = vadd.s32 %v28, 8
    %v30 = vadd.s32 %v28, 16
    %v31 = vlaneseq
    %v32 = vand.u32 %v31, 127
    %vm33 = vcmp.lt.s32.totalorder %v28, 0
    %v34 = vsub.s32 0, %v28
    %v35 = vsel %vm33, %v34, %v28
    %v36 = vshrl.u32 %v35, 1
    %v37 = vand.u32 %v35, 1
    %v38 = vsub.s32 0, %v37
    %v39 = vsel %vm33, %v38, %v37
    %vm40 = vcmp.lt.s32.totalorder %v29, 0
    %v41 = vsub.s32 0, %v29
    %v42 = vsel %vm40, %v41, %v29
    %v43 = vshrl.u32 %v42, 1
    %v44 = vand.u32 %v42, 1
    %v45 = vsub.s32 0, %v44
    %v46 = vsel %vm40, %v45, %v44
    %vm47 = vcmp.lt.s32.totalorder %v30, 0
    %v48 = vsub.s32 0, %v30
    %v49 = vsel %vm47, %v48, %v30
    %v50 = vshrl.u32 %v49, 1
    %v51 = vand.u32 %v49, 1
    %v52 = vsub.s32 0, %v51
    %v53 = vsel %vm47, %v52, %v51
    %vm54 = vcmp.ne.s32.totalorder %v39, 0
    %vm55 = vcmp.ne.s32.totalorder %v46, 0
    %vm56 = vcmp.ne.s32.totalorder %v53, 0
    %vm57 = vcmp.lt.s32.totalorder %v39, 0
    %vm58 = vcmp.lt.s32.totalorder %v46, 0
    %vm59 = vcmp.lt.s32.totalorder %v53, 0
    %vm60 = vmand %vm57, %vm54
    %vm61 = vmand %vm58, %vm55
    %vm62 = vmand %vm59, %vm56
    %v63 = vadd.s32 %v39, 2
    %v64 = vadd.s32 %v46, 2
    %v65 = vadd.s32 %v53, 2
    %v66 = vsel %vm60, %v63, %v39
    %v67 = vsel %vm61, %v64, %v46
    %v68 = vsel %vm62, %v65, %v53
    %vm69 = vcmp.eq.s32.totalorder %v66, 1
    %vm70 = vcmp.eq.s32.totalorder %v67, 1
    %vm71 = vcmp.eq.s32.totalorder %v68, 1
    %vm72 = vcmp.lt.s32.totalorder %v32, 0
    %v73 = vsub.s32 0, %v32
    %v74 = vsel %vm72, %v73, %v32
    %v75 = vshrl.u32 %v74, 1
    %v76 = vand.u32 %v74, 1
    %v77 = vsub.s32 0, %v76
    %v78 = vsel %vm72, %v77, %v76
    %vm79 = vcmp.ne.s32.totalorder %v78, 0
    %vm80 = vcmp.lt.s32.totalorder %v78, 0
    %vm81 = vmand %vm80, %vm79
    %v82 = vadd.s32 %v78, 2
    %v83 = vsel %vm81, %v82, %v78
    %vm84 = vcmp.eq.s32.totalorder %v83, 1
    %vm85 = vmand %vm69, %vm84
    %vm86 = vmand %vm70, %vm84
    %vm87 = vmand %vm71, %vm84
    %v88 = vsel %vm85, 1.0, 0.0
    %v89 = vsel %vm86, 1.0, 0.0
    %v90 = vsel %vm87, 1.0, 0.0
    %v91 = vstv %s25
    %v92 = vmul.f32 %v91, %v88
    %v93 = vmul.f32 %v91, %v89
    %v94 = vmul.f32 %v91, %v90
    %v95 = vstv %s26
    %v96 = vadd.f32 %v95, %v92
    %v97 = vadd.f32 %v95, %v93
    %v98 = vadd.f32 %v95, %v94
    %99 = vst [vmem:[%s2] sm:$0xff] %v96
    %100 = vst [vmem:[%s2 + $0x8] sm:$0xff] %v97
    %101 = vst [vmem:[%s2 + $0x10] sm:$0xff] %v98
    %vm102 = vcmp.lt.s32.totalorder %v32, 0
    %v103 = vsub.s32 0, %v32
    %v104 = vsel %vm102, %v103, %v32
    %v105 = vshrl.u32 %v104, 2
    %v106 = vand.u32 %v104, 3
    %v107 = vsub.s32 0, %v106
    %v108 = vsel %vm102, %v107, %v106
    %vm109 = vcmp.ne.s32.totalorder %v108, 0
    %vm110 = vcmp.lt.s32.totalorder %v108, 0
    %vm111 = vmand %vm110, %vm109
    %v112 = vadd.s32 %v108, 4
    %v113 = vsel %vm111, %v112, %v108
    %vm114 = vcmp.eq.s32.totalorder %v113, 1
    %v115 = vmul.u32 %v28, 4
    %v116 = vadd.s32 %v32, 3
    %vm117 = vcmp.eq.s32.totalorder %v115, %v116
    %vm118 = vmand %vm114, %vm117
    %v119 = vsel %vm118, 1.0, 0.0
    %v120 = vld [vmem:[%s1] sm:$0xff]
    %vm121 = vcmask 64512
    %v123 = vsel %vm121, %v120, 0
    %125 = vmatpush.msra.mxu0 0.0
    %126 = vmatpush.msra.mxu0 0.0
    %127 = vmatpush.msra.mxu0 0.0
    %128 = vmatpush.msra.mxu0 0.0
    %129 = vmatpush.msra.mxu0 0.0
    %130 = vmatpush.msra.mxu0 0.0
    %131 = vmatpush.msra.mxu0 0.0
    %132 = vmatpush.msra.mxu0 0.0
    %133 = vmatpush.msra.mxu0 0.0
    %134 = vmatpush.msra.mxu0 0.0
    %135 = vmatpush.msra.mxu0 0.0
    %136 = vmatpush.msra.mxu0 0.0
    %137 = vmatpush.msra.mxu0 0.0
    %138 = vmatpush.msra.mxu0 0.0
    %139 = vmatpush.msra.mxu0 0.0
    %140 = vmatpush.msra.mxu0 %v119
    %141 = vmatmul.f32.gmra.mxu0 %v123
    %v142 = vpop.f32.mrf.mxu0
    %v143 = vadd.f32 0.0, %v142
    %144 = vdwg.mxu0
    %v145 = vsel %vm84, 1.0, 0.0
    %v146 = vmul.f32 %v91, %v145
    %v147 = vadd.f32 %v95, %v146
    %v148 = vstv %s24
    %v149 = vmul.f32 %v148, %v143
    %v150 = vadd.f32 %v147, %v149
    %151 = vst [vmem:[%s2] sm:$0x2] %v150
    %152 = vst [vmem:[%s2 + $0x3] sm:$0x4] %v150
    %153 = vst [vmem:[%s2 + $0x6] sm:$0x8] %v150
    %154 = vst [vmem:[%s2 + $0x9] sm:$0x10] %v150
    %155 = vst [vmem:[%s2 + $0xc] sm:$0x20] %v150
    %156 = vst [vmem:[%s2 + $0xf] sm:$0x40] %v150
    // Predicated region
    $region14: #{model_forward.1} parent=1 // pred_check
      _
    $region15: #{model_forward.1} parent=1 // pred_check_branch
      %158 = sbr.rel (0) target = $region17
    $region16: #{model_forward.1} parent=1 // pred_region
      _
    $region17: #{model_forward.1} parent=1 // pred_fallthru
      _
    // Predicated region
    $region18: #{model_forward.1} parent=1 // pred_check
      _
    $region19: #{model_forward.1} parent=1 // pred_check_branch
      %160 = sbr.rel (0) target = $region21
    $region20: #{model_forward.1} parent=1 // pred_region
      _
    $region21: #{model_forward.1} parent=1 // pred_fallthru
      _
    %161 = vsyncpa [#allocation3], 1

</llo_original>
